<compile_context>
chip_gen: v7x
topology: tpu7x:2x2x1
jax: 0.10.0
libtpu: 0.0.40
codegen_flags: <defaults>
</compile_context>

<pallas_src>
import jax
import jax.numpy as jnp
from jax.experimental import pallas as pl
from jax.experimental.pallas import tpu as pltpu


# --------------------------------------------------------------------------- #
# Kernel
# --------------------------------------------------------------------------- #
def _downsample_conv_kernel(xa_ref, xb_ref, w_ref, b_ref, o_ref, xs_ref):
    """One (sample, row-block, cout-tile) grid step.

    xa_ref : (1, M, C4p)      bf16  M = TH*Ws flattened s2d rows of this block
    xb_ref : (1, 1, Ws, C4p)  bf16  one-row halo (s2d row TH*(i+1))
    w_ref  : (4, C4p, Tco)    bf16  w2[dh*2+dw, (rp*2+cp)*Cin+ci, co]
    b_ref  : (1, Tco)         f32
    o_ref  : (1, M, Tco)      bf16  flat output rows (junk cols dropped in glue)
    xs_ref : (M+Ws+8, C4p)    bf16  scratch: block rows + halo row + zero slack
    """
    m, c4p = xa_ref.shape[1], xa_ref.shape[2]
    ws = xb_ref.shape[2]

    # Fill the flat scratch once per activation block.  The cout-tile axis j is
    # the innermost ("arbitrary") grid axis, so the scratch persists and is
    # reused untouched for j > 0.  Two bulk copies, no per-row loops.
    @pl.when(pl.program_id(2) == 0)
    def _fill():
        xs_ref[pl.ds(0, m), :] = xa_ref[0]
        xs_ref[pl.ds(m, ws), :] = xb_ref[0, 0]
        # Slack rows are only read by the (dh=1, dw=1) tap of the junk column.
        xs_ref[pl.ds(m + ws, 8), :] = jnp.zeros((8, c4p), xs_ref.dtype)

    # Value-level accumulation: 4 MXU matmuls + bias, one bulk lane-dense store.
    # Tap (dh, dw) is the contiguous (M, C4p) window at flat offset dh*Ws + dw.
    acc = jnp.dot(xs_ref[pl.ds(0, m), :], w_ref[0],
                  preferred_element_type=jnp.float32)
    acc = acc + jnp.dot(xs_ref[pl.ds(1, m), :], w_ref[1],
                        preferred_element_type=jnp.float32)
    acc = acc + jnp.dot(xs_ref[pl.ds(ws, m), :], w_ref[2],
                        preferred_element_type=jnp.float32)
    acc = acc + jnp.dot(xs_ref[pl.ds(ws + 1, m), :], w_ref[3],
                        preferred_element_type=jnp.float32)
    acc = acc + b_ref[...]
    o_ref[0] = acc.astype(o_ref.dtype)


# --------------------------------------------------------------------------- #
# Tiling heuristics (generation-aware)
# --------------------------------------------------------------------------- #
def _round_up(x, k):
    return (x + k - 1) // k * k


def _divisors(x):
    return [d for d in range(1, x + 1) if x % d == 0]


def _vmem_capacity_bytes():
    try:
        return int(pltpu.get_tpu_info().vmem_capacity_bytes)
    except Exception:
        return 64 << 20  # conservative (v7x per-core VMEM)


def _choose_cout_tile(c4p, cout_p, itemsize, vmem_cap):
    """Largest multiple-of-128 divisor of cout_p whose weight block stays small."""
    limit = max(vmem_cap // 6, 1 << 20)
    best = 128
    for d in _divisors(cout_p // 128):
        tco = 128 * d
        if 4 * c4p * tco * itemsize <= limit:
            best = max(best, tco)
    return best


def _choose_tiling(n, ho, wo, c4p, tco, itemsize, w_resident, vmem_cap, j_steps):
    """Pick (th, ws): th | ho, (th*ws) sublane-tile aligned, fits VMEM budget,
    preferring >= 8 total grid steps (pipelining + megacore sharding)."""
    sub = max(8, 32 // itemsize)                       # 16 for bf16, 8 for f32
    budget = max(int(vmem_cap * 0.7) - w_resident, 2 << 20)
    for extra in range(0, 2 * sub):                    # widen Ws minimally
        ws = wo + 1 + extra
        cand = []
        for t in _divisors(ho):
            m = t * ws
            if m % sub:
                continue
            need = (2 * m * c4p * itemsize             # xa block, double-buffered
                    + 2 * ws * c4p * itemsize          # halo block, double-buffered
                    + 2 * m * tco * itemsize           # out block, double-buffered
                    + (m + ws + 8) * c4p * itemsize)   # flat scratch
            if need <= budget:
                cand.append(t)
        if not cand:
            continue
        good = [t for t in cand if n * (ho // t) * j_steps >= 8]
        th = max(good) if good else min(cand)          # biggest tile w/ enough steps
        return th, ws
    return 1, _round_up(wo + 1, sub)                   # fully-aligned fallback


# --------------------------------------------------------------------------- #
# Wrapper (glue)
# --------------------------------------------------------------------------- #
def downsample_conv(x_nchw, weight, bias, *, compute_dtype=jnp.bfloat16):
    """nn.Conv2d(in_ch, out_ch, 3, stride=2, padding=1)(x): NCHW in / NCHW out."""
    n, cin, h, w = x_nchw.shape
    cout = weight.shape[0]
    assert weight.shape == (cout, cin, 3, 3)

    ho = (h - 1) // 2 + 1
    wo = (w - 1) // 2 + 1
    hs = ho + 1
    c4 = 4 * cin
    itemsize = jnp.dtype(compute_dtype).itemsize

    # Lane-dense K / N dims: pad 4*Cin and Cout to multiples of 128 so every
    # MXU operand and every HBM store is unmasked (zeros contribute nothing).
    c4p = _round_up(c4, 128)
    cout_p = _round_up(cout, 128)

    vmem_cap = _vmem_capacity_bytes()

    # Cout tiling keeps the VMEM-resident weight block small (v7x: 64 MiB).
    tco = _choose_cout_tile(c4p, cout_p, itemsize, vmem_cap)
    j_steps = cout_p // tco

    # Weights have a constant index_map: single-buffer them when they are big.
    w_block_bytes = 4 * c4p * tco * itemsize
    w_single = w_block_bytes > (4 << 20)
    w_resident = w_block_bytes * (1 if w_single else 2) + 2 * cout_p * 4

    th, ws = _choose_tiling(n, ho, wo, c4p, tco, itemsize,
                            w_resident, vmem_cap, j_steps)
    m = th * ws
    grid = (n, ho // th, j_steps)

    # ---- glue: pad + space-to-depth(2) + channel pad + row flatten.  This
    # fuses into one HBM copy; x_flat / the 4-D halo view alias the same buffer.
    xp = jnp.pad(x_nchw.astype(compute_dtype),
                 ((0, 0), (0, 0), (1, 2 * hs - 1 - h), (1, 2 * ws - 1 - w)))
    x_s2d = (xp.reshape(n, cin, hs, 2, ws, 2)
               .transpose(0, 2, 4, 3, 5, 1)
               .reshape(n, hs, ws, c4))
    x_s2d = jnp.pad(x_s2d, ((0, 0), (0, 0), (0, 0), (0, c4p - c4)))
    x_flat = x_s2d.reshape(n, hs * ws, c4p)

    # 3x3 stride-2 conv == 2x2 stride-1 conv over the s2d image:
    #   w2[dh*2+dw, (rp*2+cp)*Cin+ci, co] = W[co, ci, 2*dh+rp, 2*dw+cp]
    w_t = jnp.transpose(weight, (2, 3, 1, 0))                 # (3,3,Cin,Cout)
    w_t = jnp.pad(w_t, ((0, 1), (0, 1), (0, 0), (0, 0)))      # (4,4,Cin,Cout)
    w2 = (w_t.reshape(2, 2, 2, 2, cin, cout)
             .transpose(0, 2, 1, 3, 4, 5)
             .reshape(4, c4, cout))
    w2 = jnp.pad(w2, ((0, 0), (0, c4p - c4),
                      (0, cout_p - cout))).astype(compute_dtype)
    b2 = jnp.pad(bias, (0, cout_p - cout)).reshape(1, cout_p).astype(jnp.float32)

    # Per-core VMEM accounting: resident weights + double-buffered blocks + scratch.
    need = (w_resident
            + 2 * m * c4p * itemsize
            + 2 * ws * c4p * itemsize
            + 2 * m * tco * itemsize
            + (m + ws + 8) * c4p * itemsize)
    vmem_limit = int(min(max(need + (4 << 20), 32 << 20), int(vmem_cap * 0.9)))

    cost = pl.CostEstimate(
        flops=2 * n * ho * ws * 4 * c4p * cout_p,
        transcendentals=0,
        bytes_accessed=int(n * hs * ws * c4p * itemsize        # activations in
                           + 4 * c4p * cout_p * itemsize       # weights
                           + n * ho * ws * cout_p * itemsize   # activations out
                           + cout_p * 4),
    )

    if w_single:
        w_spec = pl.BlockSpec((4, c4p, tco), lambda b, i, j: (0, 0, j),
                              pipeline_mode=pl.Buffered(1))
    else:
        w_spec = pl.BlockSpec((4, c4p, tco), lambda b, i, j: (0, 0, j))

    out_flat = pl.pallas_call(
        _downsample_conv_kernel,
        out_shape=jax.ShapeDtypeStruct((n, ho * ws, cout_p), compute_dtype),
        grid_spec=pltpu.PrefetchScalarGridSpec(
            num_scalar_prefetch=0,
            grid=grid,
            in_specs=[
                pl.BlockSpec((1, m, c4p), lambda b, i, j: (b, i, 0)),
                pl.BlockSpec((1, 1, ws, c4p),
                             lambda b, i, j: (b, th * (i + 1), 0, 0)),
                w_spec,
                pl.BlockSpec((1, tco), lambda b, i, j: (0, j)),
            ],
            out_specs=pl.BlockSpec((1, m, tco), lambda b, i, j: (b, i, j)),
            scratch_shapes=[pltpu.VMEM((m + ws + 8, c4p), compute_dtype)],
        ),
        compiler_params=pltpu.CompilerParams(
            dimension_semantics=("parallel", "parallel", "arbitrary"),
            vmem_limit_bytes=vmem_limit,
        ),
        cost_estimate=cost,
    )(x_flat, x_s2d, w2, b2)

    # Drop junk columns / padded channels and go back to NCHW (one fused copy).
    y = out_flat.reshape(n, ho, ws, cout_p)[:, :, :wo, :cout]
    return jnp.transpose(y, (0, 3, 1, 2)).astype(x_nchw.dtype)


# --------------------------------------------------------------------------- #
# Self-test
# --------------------------------------------------------------------------- #
if __name__ == "__main__":
    # Downsample(in_ch=4, out_ch=4, use_conv=True) at small shapes
    in_ch, out_ch = 4, 4
    N, H, W = 2, 16, 16

    key = jax.random.PRNGKey(0)
    kx, kw, kb = jax.random.split(key, 3)
    x = jax.random.normal(kx, (N, in_ch, H, W), dtype=jnp.float32)
    weight = jax.random.normal(kw, (out_ch, in_ch, 3, 3), dtype=jnp.float32) * 0.1
    bias = jax.random.normal(kb, (out_ch,), dtype=jnp.float32) * 0.1

    y = jax.jit(downsample_conv)(x, weight, bias)
    y = jax.block_until_ready(y)

    # Reference: XLA conv on the same bf16-rounded operands (the kernel feeds
    # bf16 to the MXU, accumulates in f32 and writes a bf16 result).
    xr = x.astype(jnp.bfloat16).astype(jnp.float32)
    wr = weight.astype(jnp.bfloat16).astype(jnp.float32)
    ref = jax.lax.conv_general_dilated(
        xr, wr, window_strides=(2, 2), padding=((1, 1), (1, 1)),
        dimension_numbers=("NCHW", "OIHW", "NCHW"),
        precision=jax.lax.Precision.HIGHEST) + bias.reshape(1, -1, 1, 1)

    assert y.shape == (N, out_ch, H // 2, W // 2), y.shape
    max_err = float(jnp.max(jnp.abs(y - ref)))
    assert max_err < 2e-2, max_err   # bf16 output rounding bound
    print("KERNEL_OK")
</pallas_src>

<mosaic_0001>
module attributes {stable_mosaic.version = 11 : i64} {
  func.func @_downsample_conv_kernel(%arg0: i32, %arg1: i32, %arg2: i32, %arg3: memref<1x80x128xbf16, #tpu.memory_space<vmem>>, %arg4: memref<1x1x10x128xbf16, #tpu.memory_space<vmem>>, %arg5: memref<4x128x128xbf16, #tpu.memory_space<vmem>>, %arg6: memref<1x128xf32, #tpu.memory_space<vmem>>, %arg7: memref<1x80x128xbf16, #tpu.memory_space<vmem>>, %arg8: memref<98x128xbf16, #tpu.memory_space<vmem>>) attributes {dimension_semantics = [#tpu.dimension_semantics<parallel>, #tpu.dimension_semantics<parallel>, #tpu.dimension_semantics<arbitrary>], iteration_bounds = array<i64: 2, 1, 1>, scalar_prefetch = 0 : i64, scratch_operands = 1 : i64, tpu.core_type = #tpu.core_type<tc>, window_params = [{transform_indices = @transform_0, window_bounds = array<i64: 1, 80, 128>}, {transform_indices = @transform_1, window_bounds = array<i64: 1, 1, 10, 128>}, {transform_indices = @transform_2, window_bounds = array<i64: 4, 128, 128>}, {transform_indices = @transform_3, window_bounds = array<i64: 1, 128>}, {transform_indices = @transform_4, window_bounds = array<i64: 1, 80, 128>}]} {
    %c0_i32 = arith.constant 0 : i32
    %0 = arith.cmpi eq, %arg2, %c0_i32 : i32
    %1 = arith.extui %0 : i1 to i32
    %c0_i32_0 = arith.constant 0 : i32
    %2 = arith.cmpi ne, %1, %c0_i32_0 : i32
    scf.if %2 {
      %c0_23 = arith.constant 0 : index
      %c0_24 = arith.constant 0 : index
      %c0_25 = arith.constant 0 : index
      %29 = vector.load %arg3[%c0_23, %c0_24, %c0_25] : memref<1x80x128xbf16, #tpu.memory_space<vmem>>, vector<1x80x128xbf16>
      %30 = vector.shape_cast %29 : vector<1x80x128xbf16> to vector<80x128xbf16>
      %c0_26 = arith.constant 0 : index
      %c0_27 = arith.constant 0 : index
      %31 = vector.load %arg8[%c0_26, %c0_27] : memref<98x128xbf16, #tpu.memory_space<vmem>>, vector<80x128xbf16>
      tpu.vector_store %arg8[%c0_26, %c0_27], %30 {strides = array<i32>} : memref<98x128xbf16, #tpu.memory_space<vmem>>, vector<80x128xbf16>,
      %c0_28 = arith.constant 0 : index
      %c0_29 = arith.constant 0 : index
      %c0_30 = arith.constant 0 : index
      %c0_31 = arith.constant 0 : index
      %32 = vector.load %arg4[%c0_28, %c0_29, %c0_30, %c0_31] : memref<1x1x10x128xbf16, #tpu.memory_space<vmem>>, vector<1x1x10x128xbf16>
      %33 = vector.shape_cast %32 : vector<1x1x10x128xbf16> to vector<10x128xbf16>
      %c80 = arith.constant 80 : index
      %c0_32 = arith.constant 0 : index
      %34 = vector.load %arg8[%c80, %c0_32] : memref<98x128xbf16, #tpu.memory_space<vmem>>, vector<10x128xbf16>
      tpu.vector_store %arg8[%c80, %c0_32], %33 {strides = array<i32>} : memref<98x128xbf16, #tpu.memory_space<vmem>>, vector<10x128xbf16>,
      %cst_33 = arith.constant 0.000000e+00 : bf16
      %35 = vector.broadcast %cst_33 : bf16 to vector<8x128xbf16>
      %c90 = arith.constant 90 : index
      %c0_34 = arith.constant 0 : index
      %36 = vector.load %arg8[%c90, %c0_34] : memref<98x128xbf16, #tpu.memory_space<vmem>>, vector<8x128xbf16>
      tpu.vector_store %arg8[%c90, %c0_34], %35 {strides = array<i32>} : memref<98x128xbf16, #tpu.memory_space<vmem>>, vector<8x128xbf16>,
    } else {
    }
    %c0 = arith.constant 0 : index
    %c0_1 = arith.constant 0 : index
    %3 = vector.load %arg8[%c0, %c0_1] : memref<98x128xbf16, #tpu.memory_space<vmem>>, vector<80x128xbf16>
    %c0_2 = arith.constant 0 : index
    %c0_3 = arith.constant 0 : index
    %c0_4 = arith.constant 0 : index
    %4 = vector.load %arg5[%c0_2, %c0_3, %c0_4] : memref<4x128x128xbf16, #tpu.memory_space<vmem>>, vector<1x128x128xbf16>
    %5 = vector.shape_cast %4 : vector<1x128x128xbf16> to vector<128x128xbf16>
    %cst = arith.constant dense<0.000000e+00> : vector<80x128xf32>
    %6 = tpu.matmul %3, %5, %cst {dimension_numbers = #tpu.dot_dimension_numbers<[1], [0], [0], [1], [0, 0, 1, 1], [], []>} : vector<80x128xbf16>, vector<128x128xbf16>, vector<80x128xf32> -> vector<80x128xf32>
    %c1 = arith.constant 1 : index
    %c0_5 = arith.constant 0 : index
    %7 = vector.load %arg8[%c1, %c0_5] : memref<98x128xbf16, #tpu.memory_space<vmem>>, vector<80x128xbf16>
    %c1_6 = arith.constant 1 : index
    %c0_7 = arith.constant 0 : index
    %c0_8 = arith.constant 0 : index
    %8 = vector.load %arg5[%c1_6, %c0_7, %c0_8] : memref<4x128x128xbf16, #tpu.memory_space<vmem>>, vector<1x128x128xbf16>
    %9 = vector.shape_cast %8 : vector<1x128x128xbf16> to vector<128x128xbf16>
    %cst_9 = arith.constant dense<0.000000e+00> : vector<80x128xf32>
    %10 = tpu.matmul %7, %9, %cst_9 {dimension_numbers = #tpu.dot_dimension_numbers<[1], [0], [0], [1], [0, 0, 1, 1], [], []>} : vector<80x128xbf16>, vector<128x128xbf16>, vector<80x128xf32> -> vector<80x128xf32>
    %11 = arith.addf %6, %10 : vector<80x128xf32>
    %c10 = arith.constant 10 : index
    %c0_10 = arith.constant 0 : index
    %12 = vector.load %arg8[%c10, %c0_10] : memref<98x128xbf16, #tpu.memory_space<vmem>>, vector<80x128xbf16>
    %c2 = arith.constant 2 : index
    %c0_11 = arith.constant 0 : index
    %c0_12 = arith.constant 0 : index
    %13 = vector.load %arg5[%c2, %c0_11, %c0_12] : memref<4x128x128xbf16, #tpu.memory_space<vmem>>, vector<1x128x128xbf16>
    %14 = vector.shape_cast %13 : vector<1x128x128xbf16> to vector<128x128xbf16>
    %cst_13 = arith.constant dense<0.000000e+00> : vector<80x128xf32>
    %15 = tpu.matmul %12, %14, %cst_13 {dimension_numbers = #tpu.dot_dimension_numbers<[1], [0], [0], [1], [0, 0, 1, 1], [], []>} : vector<80x128xbf16>, vector<128x128xbf16>, vector<80x128xf32> -> vector<80x128xf32>
    %16 = arith.addf %11, %15 : vector<80x128xf32>
    %c11 = arith.constant 11 : index
    %c0_14 = arith.constant 0 : index
    %17 = vector.load %arg8[%c11, %c0_14] : memref<98x128xbf16, #tpu.memory_space<vmem>>, vector<80x128xbf16>
    %c3 = arith.constant 3 : index
    %c0_15 = arith.constant 0 : index
    %c0_16 = arith.constant 0 : index
    %18 = vector.load %arg5[%c3, %c0_15, %c0_16] : memref<4x128x128xbf16, #tpu.memory_space<vmem>>, vector<1x128x128xbf16>
    %19 = vector.shape_cast %18 : vector<1x128x128xbf16> to vector<128x128xbf16>
    %cst_17 = arith.constant dense<0.000000e+00> : vector<80x128xf32>
    %20 = tpu.matmul %17, %19, %cst_17 {dimension_numbers = #tpu.dot_dimension_numbers<[1], [0], [0], [1], [0, 0, 1, 1], [], []>} : vector<80x128xbf16>, vector<128x128xbf16>, vector<80x128xf32> -> vector<80x128xf32>
    %21 = arith.addf %16, %20 : vector<80x128xf32>
    %c0_18 = arith.constant 0 : index
    %c0_19 = arith.constant 0 : index
    %22 = vector.load %arg6[%c0_18, %c0_19] : memref<1x128xf32, #tpu.memory_space<vmem>>, vector<1x128xf32>
    %23 = vector.broadcast %22 : vector<1x128xf32> to vector<80x128xf32>
    %24 = arith.addf %21, %23 : vector<80x128xf32>
    %25 = arith.truncf %24 : vector<80x128xf32> to vector<80x128xbf16>
    %c0_20 = arith.constant 0 : index
    %c0_21 = arith.constant 0 : index
    %c0_22 = arith.constant 0 : index
    %26 = vector.load %arg7[%c0_20, %c0_21, %c0_22] : memref<1x80x128xbf16, #tpu.memory_space<vmem>>, vector<1x80x128xbf16>
    %27 = vector.shape_cast %26 : vector<1x80x128xbf16> to vector<80x128xbf16>
    %28 = vector.shape_cast %25 : vector<80x128xbf16> to vector<1x80x128xbf16>
    tpu.vector_store %arg7[%c0_20, %c0_21, %c0_22], %28 {strides = array<i32>} : memref<1x80x128xbf16, #tpu.memory_space<vmem>>, vector<1x80x128xbf16>,
    return
  }
  func.func @transform_0(%arg0: i32, %arg1: i32, %arg2: i32) -> (i32, i32, i32) {
    %c0_i32 = arith.constant 0 : i32
    %c0_i32_0 = arith.constant 0 : i32
    return %arg0, %arg1, %c0_i32 : i32, i32, i32
  }
  func.func @transform_1(%arg0: i32, %arg1: i32, %arg2: i32) -> (i32, i32, i32, i32) {
    %c1_i32 = arith.constant 1 : i32
    %0 = arith.addi %arg1, %c1_i32 : i32
    %c8_i32 = arith.constant 8 : i32
    %1 = arith.muli %c8_i32, %0 : i32
    %c0_i32 = arith.constant 0 : i32
    %c0_i32_0 = arith.constant 0 : i32
    %c0_i32_1 = arith.constant 0 : i32
    return %arg0, %1, %c0_i32, %c0_i32_0 : i32, i32, i32, i32
  }
  func.func @transform_2(%arg0: i32, %arg1: i32, %arg2: i32) -> (i32, i32, i32) {
    %c0_i32 = arith.constant 0 : i32
    %c0_i32_0 = arith.constant 0 : i32
    %c0_i32_1 = arith.constant 0 : i32
    return %c0_i32, %c0_i32_0, %arg2 : i32, i32, i32
  }
  func.func @transform_3(%arg0: i32, %arg1: i32, %arg2: i32) -> (i32, i32) {
    %c0_i32 = arith.constant 0 : i32
    %c0_i32_0 = arith.constant 0 : i32
    return %c0_i32, %arg2 : i32, i32
  }
  func.func @transform_4(%arg0: i32, %arg1: i32, %arg2: i32) -> (i32, i32, i32) {
    %c0_i32 = arith.constant 0 : i32
    return %arg0, %arg1, %arg2 : i32, i32, i32
  }
}

</mosaic_0001>

<llo_original>
// kernel: downsample_conv.1
$region0: #{downsample_conv.1}
  #allocation0 [shape = 'u32[]', space=smem, size = 0x4, offset = 0x4, fixed_abs, tag = 'smem constant byte address 0x4 - core index']
  #allocation1 [shape = 'u32[144,128]{1,0:T(1,128)}', space=vmem, size = 0x12000, scoped, tag = 'internal scratch']
  #allocation2 [shape = 'bf16[98,128]{1,0:T(8,128)(2,1)}', space=vmem, size = 0x6800, scoped, tag = 'scratch operand']
  %s0 = inlined_call_operand.vmem [shape: bf16[2,90,128], index: 0, kind: input, shape index: {}]
  %s1 = inlined_call_operand.vmem [shape: bf16[2,9,10,128], index: 1, kind: input, shape index: {}]
  %s2 = inlined_call_operand.vmem [shape: bf16[4,128,128], index: 2, kind: input, shape index: {}]
  %s3 = inlined_call_operand.vmem [shape: f32[1,128], index: 3, kind: input, shape index: {}]
  %s4 = inlined_call_operand.vmem [shape: bf16[2,80,128], index: 4, kind: output, shape index: {}]
  %s5 = sld [smem:[#allocation0]]
  $region53: #{downsample_conv.1} parent=0
    _
  %s7 = ssub.s32 1, %s5
  %s8 = scalar_select 0, %s7, %s5
  loop: start=0, step=1, limit=4
  $region2: #{downsample_conv.1} parent=0 // loop_pre_header
    _
  $region3: #{downsample_conv.1} parent=0 // loop_header
    %s10 = sphi 0, %s14
    %p11 = scmp.ge.s32.totalorder %s10, 4
    %s17 = sphi 0, %s36
    %s18 = sphi 0, %s32
    %s19 = sphi 0, %s28
    %s20 = sphi 0, %s17
    %s21 = sphi 0, %s18
    %s22 = sphi 0, %s19
    %s23 = sphi 0, %s20
    %s24 = sphi 0, %s21
    %s25 = sphi 0, %s22
    %s41 = sphi 0, %s43
    %s44 = sphi 0, %s41
    %s45 = sphi 0, %s44
    %s61 = sphi 0, %s45
    %s73 = sphi 0, %s75
    %s76 = sphi 0, %s73
    %s77 = sphi 0, %s76
    %s93 = sphi 0, %s77
    %s99 = sphi 0, %s101
    %s102 = sphi 0, %s99
    %s103 = sphi 0, %s102
    %s119 = sphi 0, %s103
    %s125 = sphi 0, %s127
    %s128 = sphi 0, %s125
    %s129 = sphi 0, %s128
    %s145 = sphi 0, %s129
    %s155 = sphi 0, %s157
    %s158 = sphi 0, %s155
    %s159 = sphi 0, %s158
    %s175 = sphi 0, %s159
  $region4: #{downsample_conv.1} parent=0 // loop_header_branch
    %13 = sbr.rel (%p11) target = $region8
  $region5: #{downsample_conv.1} parent=0 // loop_body
    %s15 = ssub.s32 %s10, 1
    %s16 = ssub.s32 %s10, 2
    %s26 = sadd.s32 1, %s19
    %p27 = scmp.ge.s32.totalorder %s26, 1
    %s28 = scalar_select %p27, 0, %s26
    %s29 = sadd.s32 1, %s18
    %s30 = scalar_select %p27, %s29, %s18
    %p31 = scmp.ge.s32.totalorder %s30, 1
    %s32 = scalar_select %p31, 0, %s30
    %s33 = sadd.s32 1, %s17
    %s34 = scalar_select %p31, %s33, %s17
    %p35 = scmp.ge.s32.totalorder %s34, 2
    %s36 = scalar_select %p35, 0, %s34
    %s37 = ssub.s32 %s17, %s36
    %s38 = ssub.s32 %s18, %s32
    %s39 = sor.u32 %s37, %s38
    %p40 = scmp.eq.s32.totalorder %s39, 0
    %s42 = sadd.s32 %s41, 1
    %s43 = scalar_select %p40, %s41, %s42
    %p46 = pneg %p40
    %p47 = scmp.eq.s32.totalorder %s10, 1
    %p48 = por %p46, %p47
    %p49 = scmp.ne.s32.totalorder %s41, %s44
    %p50 = scmp.eq.s32.totalorder %s10, 0
    %p51 = por %p49, %p50
    %p52 = scmp.ne.s32.totalorder %s41, %s44
    %p53 = scmp.eq.s32.totalorder %s15, 1
    %p54 = por %p52, %p53
    %p55 = scmp.ne.s32.totalorder %s44, %s45
    %p56 = scmp.eq.s32.totalorder %s15, 0
    %p57 = por %p55, %p56
    %p58 = scmp.ne.s32.totalorder %s44, %s45
    %p59 = scmp.eq.s32.totalorder %s16, 1
    %p60 = por %p58, %p59
    %p62 = scmp.ne.s32.totalorder %s45, %s61
    %p63 = scmp.eq.s32.totalorder %s16, 0
    %p64 = por %p62, %p63
    %s65 = sadd.s32 %s18, 1
    %s66 = smul.u32 %s65, 8
    %s67 = sadd.s32 %s32, 1
    %s68 = smul.u32 %s67, 8
    %s69 = ssub.s32 %s17, %s36
    %s70 = ssub.s32 %s66, %s68
    %s71 = sor.u32 %s69, %s70
    %p72 = scmp.eq.s32.totalorder %s71, 0
    %s74 = sadd.s32 %s73, 1
    %s75 = scalar_select %p72, %s73, %s74
    %p78 = pneg %p72
    %p79 = scmp.eq.s32.totalorder %s10, 1
    %p80 = por %p78, %p79
    %p81 = scmp.ne.s32.totalorder %s73, %s76
    %p82 = scmp.eq.s32.totalorder %s10, 0
    %p83 = por %p81, %p82
    %p84 = scmp.ne.s32.totalorder %s73, %s76
    %p85 = scmp.eq.s32.totalorder %s15, 1
    %p86 = por %p84, %p85
    %p87 = scmp.ne.s32.totalorder %s76, %s77
    %p88 = scmp.eq.s32.totalorder %s15, 0
    %p89 = por %p87, %p88
    %p90 = scmp.ne.s32.totalorder %s76, %s77
    %p91 = scmp.eq.s32.totalorder %s16, 1
    %p92 = por %p90, %p91
    %p94 = scmp.ne.s32.totalorder %s77, %s93
    %p95 = scmp.eq.s32.totalorder %s16, 0
    %p96 = por %p94, %p95
    %s97 = ssub.s32 %s19, %s28
    %p98 = scmp.eq.s32.totalorder %s97, 0
    %s100 = sadd.s32 %s99, 1
    %s101 = scalar_select %p98, %s99, %s100
    %p104 = pneg %p98
    %p105 = scmp.eq.s32.totalorder %s10, 1
    %p106 = por %p104, %p105
    %p107 = scmp.ne.s32.totalorder %s99, %s102
    %p108 = scmp.eq.s32.totalorder %s10, 0
    %p109 = por %p107, %p108
    %p110 = scmp.ne.s32.totalorder %s99, %s102
    %p111 = scmp.eq.s32.totalorder %s15, 1
    %p112 = por %p110, %p111
    %p113 = scmp.ne.s32.totalorder %s102, %s103
    %p114 = scmp.eq.s32.totalorder %s15, 0
    %p115 = por %p113, %p114
    %p116 = scmp.ne.s32.totalorder %s102, %s103
    %p117 = scmp.eq.s32.totalorder %s16, 1
    %p118 = por %p116, %p117
    %p120 = scmp.ne.s32.totalorder %s103, %s119
    %p121 = scmp.eq.s32.totalorder %s16, 0
    %p122 = por %p120, %p121
    %s123 = ssub.s32 %s19, %s28
    %p124 = scmp.eq.s32.totalorder %s123, 0
    %s126 = sadd.s32 %s125, 1
    %s127 = scalar_select %p124, %s125, %s126
    %p130 = pneg %p124
    %p131 = scmp.eq.s32.totalorder %s10, 1
    %p132 = por %p130, %p131
    %p133 = scmp.ne.s32.totalorder %s125, %s128
    %p134 = scmp.eq.s32.totalorder %s10, 0
    %p135 = por %p133, %p134
    %p136 = scmp.ne.s32.totalorder %s125, %s128
    %p137 = scmp.eq.s32.totalorder %s15, 1
    %p138 = por %p136, %p137
    %p139 = scmp.ne.s32.totalorder %s128, %s129
    %p140 = scmp.eq.s32.totalorder %s15, 0
    %p141 = por %p139, %p140
    %p142 = scmp.ne.s32.totalorder %s128, %s129
    %p143 = scmp.eq.s32.totalorder %s16, 1
    %p144 = por %p142, %p143
    %p146 = scmp.ne.s32.totalorder %s129, %s145
    %p147 = scmp.eq.s32.totalorder %s16, 0
    %p148 = por %p146, %p147
    %s149 = ssub.s32 %s17, %s36
    %s150 = ssub.s32 %s18, %s32
    %s151 = sor.u32 %s149, %s150
    %s152 = ssub.s32 %s19, %s28
    %s153 = sor.u32 %s151, %s152
    %p154 = scmp.eq.s32.totalorder %s153, 0
    %s156 = sadd.s32 %s155, 1
    %s157 = scalar_select %p154, %s155, %s156
    %p160 = pneg %p154
    %p161 = scmp.eq.s32.totalorder %s10, 1
    %p162 = por %p160, %p161
    %p163 = scmp.ne.s32.totalorder %s155, %s158
    %p164 = scmp.eq.s32.totalorder %s10, 0
    %p165 = por %p163, %p164
    %p166 = scmp.ne.s32.totalorder %s155, %s158
    %p167 = scmp.eq.s32.totalorder %s15, 1
    %p168 = por %p166, %p167
    %p169 = scmp.ne.s32.totalorder %s158, %s159
    %p170 = scmp.eq.s32.totalorder %s15, 0
    %p171 = por %p169, %p170
    %p172 = scmp.ne.s32.totalorder %s158, %s159
    %p173 = scmp.eq.s32.totalorder %s16, 1
    %p174 = por %p172, %p173
    %p176 = scmp.ne.s32.totalorder %s159, %s175
    %p177 = scmp.eq.s32.totalorder %s16, 0
    %p178 = por %p176, %p177
    %p179 = scmp.le.s32.totalorder 1, %s10
    %p180 = scmp.lt.s32.totalorder %s10, 3
    %p181 = pnand %p179, %p180
    %p182 = pneg %p181
    // Predicated region
    $region9: #{downsample_conv.1} parent=5 // pred_check
      _
    $region10: #{downsample_conv.1} parent=5 // pred_check_branch
      %184 = sbr.rel (%p181) target = $region12
    $region11: #{downsample_conv.1} parent=5 // pred_region
      %s185 = ssub.s32 %s10, 1
      // Predicated region
      $region13: #{downsample_conv.1} parent=11 // pred_check
        %p186 = pneg %p115
      $region14: #{downsample_conv.1} parent=11 // pred_check_branch
        %188 = sbr.rel (%p186) target = $region16
      $region15: #{downsample_conv.1} parent=11 // pred_region
        %p189 = scmp.lt.s32.totalorder %s22, 0
        %s190 = scalar_select %p189, %s22, 0
        %s191 = smul.addr %s190, 4
        %s192 = scalar_lea.vmem %s2, %s191
      $region16: #{downsample_conv.1} parent=11 // pred_fallthru
        _
      // Predicated region
      $region17: #{downsample_conv.1} parent=11 // pred_check
        %p193 = pneg %p141
      $region18: #{downsample_conv.1} parent=11 // pred_check_branch
        %195 = sbr.rel (%p193) target = $region20
      $region19: #{downsample_conv.1} parent=11 // pred_region
        %p196 = scmp.lt.s32.totalorder %s22, 0
        %s197 = scalar_select %p196, %s22, 0
        %s198 = scalar_lea.vmem %s3, %s197
      $region20: #{downsample_conv.1} parent=11 // pred_fallthru
        _
    $region12: #{downsample_conv.1} parent=5 // pred_fallthru
      _
    %p199 = scmp.lt.s32.totalorder %s10, 2
    // Predicated region
    $region21: #{downsample_conv.1} parent=5 // pred_check
      %p200 = pneg %p199
    $region22: #{downsample_conv.1} parent=5 // pred_check_branch
      %202 = sbr.rel (%p200) target = $region24
    $region23: #{downsample_conv.1} parent=5 // pred_region
      // Predicated region
      $region25: #{downsample_conv.1} parent=23 // pred_check
        %p203 = pneg %p51
      $region26: #{downsample_conv.1} parent=23 // pred_check_branch
        %205 = sbr.rel (%p203) target = $region28
      $region27: #{downsample_conv.1} parent=23 // pred_region
        %s206 = smul.u32 10, %s18
        %s207 = ssub.s32 12, %s206
        %p208 = scmp.lt.s32.totalorder %s207, 10
        %s209 = scalar_select %p208, %s207, 10
        %s210 = smul.u32 64, %s209
        %p211 = scmp.lt.s32.totalorder %s17, 1
        %s212 = scalar_select %p211, %s17, 1
        %p213 = scmp.lt.s32.totalorder %s206, 11
        %s214 = scalar_select %p213, %s206, 11
        %s215 = smul.addr %s212, 12
        %s216 = sadd.s32 %s214, %s215
        %s217 = smul.addr %s216, 4
        %s218 = scalar_lea.vmem %s0, %s217
        %s219 = smul.u32 10, %s18
        %s220 = ssub.s32 12, %s219
        %p221 = scmp.lt.s32.totalorder %s220, 10
        %s222 = scalar_select %p221, %s220, 10
        %s223 = smul.u32 64, %s222
      $region28: #{downsample_conv.1} parent=23 // pred_fallthru
        _
      // Predicated region
      $region29: #{downsample_conv.1} parent=23 // pred_check
        %p224 = pneg %p83
      $region30: #{downsample_conv.1} parent=23 // pred_check_branch
        %226 = sbr.rel (%p224) target = $region32
      $region31: #{downsample_conv.1} parent=23 // pred_region
        %s227 = sadd.s32 %s18, 1
        %s228 = smul.u32 %s227, 8
        %p229 = scmp.lt.s32.totalorder %s17, 1
        %s230 = scalar_select %p229, %s17, 1
        %p231 = scmp.lt.s32.totalorder %s228, 8
        %s232 = scalar_select %p231, %s228, 8
        %s233 = smul.addr %s232, 2
        %s234 = smul.addr %s230, 18
        %s235 = sadd.s32 %s233, %s234
        %s236 = smul.addr %s235, 4
        %s237 = scalar_lea.vmem %s1, %s236
        %s238 = sadd.s32 %s18, 1
        %s239 = smul.u32 %s238, 8
      $region32: #{downsample_conv.1} parent=23 // pred_fallthru
        _
    $region24: #{downsample_conv.1} parent=5 // pred_fallthru
      _
    %p240 = scmp.le.s32.totalorder 1, %s10
    %p241 = scmp.lt.s32.totalorder %s10, 3
    %p242 = pnand %p240, %p241
    %p243 = pneg %p242
    // Predicated region
    $region33: #{downsample_conv.1} parent=5 // pred_check
      _
    $region34: #{downsample_conv.1} parent=5 // pred_check_branch
      %245 = sbr.rel (%p242) target = $region36
    $region35: #{downsample_conv.1} parent=5 // pred_region
      %s246 = ssub.s32 %s10, 1
      %s247 = smul.u32 10, %s21
      %s248 = ssub.s32 12, %s247
      %p249 = scmp.lt.s32.totalorder %s248, 10
      %s250 = scalar_select %p249, %s248, 10
      %s251 = smul.u32 64, %s250
      %p252 = scmp.lt.s32.totalorder %s20, 1
      %s253 = scalar_select %p252, %s20, 1
      %p254 = scmp.lt.s32.totalorder %s247, 11
      %s255 = scalar_select %p254, %s247, 11
      %s256 = smul.addr %s253, 12
      %s257 = sadd.s32 %s255, %s256
      %s258 = smul.addr %s257, 4
      %s259 = scalar_lea.vmem %s0, %s258
      %p260 = pneg %p57
      %p261 = pneg %p54
      %s262 = sadd.s32 %s21, 1
      %s263 = smul.u32 %s262, 8
      %p264 = scmp.lt.s32.totalorder %s20, 1
      %s265 = scalar_select %p264, %s20, 1
      %p266 = scmp.lt.s32.totalorder %s263, 8
      %s267 = scalar_select %p266, %s263, 8
      %s268 = smul.addr %s267, 2
      %s269 = smul.addr %s265, 18
      %s270 = sadd.s32 %s268, %s269
      %s271 = smul.addr %s270, 4
      %s272 = scalar_lea.vmem %s1, %s271
      %p273 = pneg %p89
      %p274 = pneg %p86
      %p275 = scmp.lt.s32.totalorder %s22, 0
      %s276 = scalar_select %p275, %s22, 0
      %s277 = smul.addr %s276, 4
      %s278 = scalar_lea.vmem %s2, %s277
      %p279 = pneg %p115
      %p280 = pneg %p112
      %p281 = scmp.lt.s32.totalorder %s22, 0
      %s282 = scalar_select %p281, %s22, 0
      %s283 = scalar_lea.vmem %s3, %s282
      %p284 = pneg %p141
      %p285 = pneg %p138
      %p286 = pneg %p171
      %p287 = pneg %p168
      %s288 = smul.u32 10, %s21
      %p289 = scmp.lt.s32.totalorder %s20, 1
      %s290 = scalar_select %p289, %s20, 1
      %p291 = scmp.lt.s32.totalorder %s288, 9
      %s292 = scalar_select %p291, %s288, 9
      %p293 = scmp.lt.s32.totalorder %s22, 0
      %s294 = scalar_select %p293, %s22, 0
      %s295 = sadd.s32 %s294, %s292
      %s296 = smul.addr %s290, 10
      %s297 = sadd.s32 %s295, %s296
      %s298 = smul.addr %s297, 4
      %s299 = scalar_lea.vmem %s4, %s298
      %s300 = smul.u32 10, %s21
      %s301 = ssub.s32 12, %s300
      %p302 = scmp.lt.s32.totalorder %s301, 10
      %s303 = scalar_select %p302, %s301, 10
      %s304 = smul.u32 64, %s303
      %p305 = scmp.lt.s32.totalorder %s20, 1
      %s306 = scalar_select %p305, %s20, 1
      %p307 = scmp.lt.s32.totalorder %s300, 11
      %s308 = scalar_select %p307, %s300, 11
      %s309 = smul.addr %s306, 12
      %s310 = sadd.s32 %s308, %s309
      %s311 = smul.addr %s310, 4
      %s312 = scalar_lea.vmem %s0, %s311
      %s313 = smul.u32 10, %s21
      %s314 = ssub.s32 12, %s313
      %p315 = scmp.lt.s32.totalorder %s314, 10
      %s316 = scalar_select %p315, %s314, 10
      %s317 = smul.u32 64, %s316
      %s318 = sadd.s32 %s21, 1
      %s319 = smul.u32 %s318, 8
      %p320 = scmp.lt.s32.totalorder %s20, 1
      %s321 = scalar_select %p320, %s20, 1
      %p322 = scmp.lt.s32.totalorder %s319, 8
      %s323 = scalar_select %p322, %s319, 8
      %s324 = smul.addr %s323, 2
      %s325 = smul.addr %s321, 18
      %s326 = sadd.s32 %s324, %s325
      %s327 = smul.addr %s326, 4
      %s328 = scalar_lea.vmem %s1, %s327
      %s329 = sadd.s32 %s21, 1
      %s330 = smul.u32 %s329, 8
      %p331 = scmp.lt.s32.totalorder %s22, 0
      %s332 = scalar_select %p331, %s22, 0
      %s333 = smul.addr %s332, 4
      %s334 = scalar_lea.vmem %s2, %s333
      %p335 = scmp.lt.s32.totalorder %s22, 0
      %s336 = scalar_select %p335, %s22, 0
      %s337 = scalar_lea.vmem %s3, %s336
      %s338 = smul.u32 10, %s21
      %p339 = scmp.lt.s32.totalorder %s20, 1
      %s340 = scalar_select %p339, %s20, 1
      %p341 = scmp.lt.s32.totalorder %s338, 9
      %s342 = scalar_select %p341, %s338, 9
      %p343 = scmp.lt.s32.totalorder %s22, 0
      %s344 = scalar_select %p343, %s22, 0
      %s345 = sadd.s32 %s344, %s342
      %s346 = smul.addr %s340, 10
      %s347 = sadd.s32 %s345, %s346
      %s348 = smul.addr %s347, 4
      %s349 = scalar_lea.vmem %s4, %s348
      %s350 = smul.u32 10, %s21
      %p352 = scmp.eq.s32.totalorder %s22, 0
      // Predicated region
      $region37: #{downsample_conv.1} parent=35 // pred_check
        %p353 = pneg %p352
      $region38: #{downsample_conv.1} parent=35 // pred_check_branch
        %355 = sbr.rel (%p353) target = $region40
      $region39: #{downsample_conv.1} parent=35 // pred_region
        %v356 = vld [vmem:[%s312] sm:$0xf]
        %v357 = vld [vmem:[%s312 + $0x4] sm:$0xf]
        %v358 = vld [vmem:[%s312 + $0x8] sm:$0xf]
        %v359 = vld [vmem:[%s312 + $0xc] sm:$0xf]
        %v360 = vld [vmem:[%s312 + $0x10] sm:$0xf]
        %v361 = vld [vmem:[%s312 + $0x14] sm:$0xf]
        %v362 = vld [vmem:[%s312 + $0x18] sm:$0xf]
        %v363 = vld [vmem:[%s312 + $0x1c] sm:$0xf]
        %v364 = vld [vmem:[%s312 + $0x20] sm:$0xf]
        %v365 = vld [vmem:[%s312 + $0x24] sm:$0xf]
        %366 = vst [vmem:[#allocation2] sm:$0xf] %v356
        %367 = vst [vmem:[#allocation2 + $0x4] sm:$0xf] %v357
        %368 = vst [vmem:[#allocation2 + $0x8] sm:$0xf] %v358
        %369 = vst [vmem:[#allocation2 + $0xc] sm:$0xf] %v359
        %370 = vst [vmem:[#allocation2 + $0x10] sm:$0xf] %v360
        %371 = vst [vmem:[#allocation2 + $0x14] sm:$0xf] %v361
        %372 = vst [vmem:[#allocation2 + $0x18] sm:$0xf] %v362
        %373 = vst [vmem:[#allocation2 + $0x1c] sm:$0xf] %v363
        %374 = vst [vmem:[#allocation2 + $0x20] sm:$0xf] %v364
        %375 = vst [vmem:[#allocation2 + $0x24] sm:$0xf] %v365
        %v376 = vld [vmem:[%s328] sm:$0xf]
        %v377 = vld [vmem:[%s328 + $0x4] sm:$0x1]
        %378 = vst [vmem:[#allocation2 + $0x28] sm:$0xf] %v376
        %379 = vst [vmem:[#allocation2 + $0x2c] sm:$0x1] %v377
        %380 = vst [vmem:[#allocation2 + $0x2c] sm:$0xe] 0
        %381 = vst [vmem:[#allocation2 + $0x30] sm:$0x1] 0
      $region40: #{downsample_conv.1} parent=35 // pred_fallthru
        _
      %v382 = vld [vmem:[#allocation2] sm:$0xf]
      %v383 = vld [vmem:[#allocation2 + $0x4] sm:$0xf]
      %v384 = vld [vmem:[#allocation2 + $0x8] sm:$0xf]
      %v385 = vld [vmem:[#allocation2 + $0xc] sm:$0xf]
      %v386 = vld [vmem:[#allocation2 + $0x10] sm:$0xf]
      %v387 = vld [vmem:[#allocation2 + $0x14] sm:$0xf]
      %v388 = vld [vmem:[#allocation2 + $0x18] sm:$0xf]
      %v389 = vld [vmem:[#allocation2 + $0x1c] sm:$0xf]
      %v390 = vld [vmem:[#allocation2 + $0x20] sm:$0xf]
      %v391 = vld [vmem:[#allocation2 + $0x24] sm:$0xf]
      %v392 = vld [vmem:[%s334] sm:$0xf]
      %v393 = vld [vmem:[%s334 + $0x4] sm:$0xf]
      %v394 = vld [vmem:[%s334 + $0x8] sm:$0xf]
      %v395 = vld [vmem:[%s334 + $0xc] sm:$0xf]
      %v396 = vld [vmem:[%s334 + $0x10] sm:$0xf]
      %v397 = vld [vmem:[%s334 + $0x14] sm:$0xf]
      %v398 = vld [vmem:[%s334 + $0x18] sm:$0xf]
      %v399 = vld [vmem:[%s334 + $0x1c] sm:$0xf]
      %v400 = vld [vmem:[%s334 + $0x20] sm:$0xf]
      %v401 = vld [vmem:[%s334 + $0x24] sm:$0xf]
      %v402 = vld [vmem:[%s334 + $0x28] sm:$0xf]
      %v403 = vld [vmem:[%s334 + $0x2c] sm:$0xf]
      %v404 = vld [vmem:[%s334 + $0x30] sm:$0xf]
      %v405 = vld [vmem:[%s334 + $0x34] sm:$0xf]
      %v406 = vld [vmem:[%s334 + $0x38] sm:$0xf]
      %v407 = vld [vmem:[%s334 + $0x3c] sm:$0xf]
      %v408 = vld [vmem:[#allocation2 + $0x28] sm:$0x1]
      %s409 = scalar_lea.vmem %s334, 64
      %v410 = vld [vmem:[%s409] sm:$0xf]
      %v411 = vld [vmem:[%s409 + $0x4] sm:$0xf]
      %v412 = vld [vmem:[%s409 + $0x8] sm:$0xf]
      %v413 = vld [vmem:[%s409 + $0xc] sm:$0xf]
      %v414 = vld [vmem:[%s409 + $0x10] sm:$0xf]
      %v415 = vld [vmem:[%s409 + $0x14] sm:$0xf]
      %v416 = vld [vmem:[%s409 + $0x18] sm:$0xf]
      %v417 = vld [vmem:[%s409 + $0x1c] sm:$0xf]
      %v418 = vld [vmem:[%s409 + $0x20] sm:$0xf]
      %v419 = vld [vmem:[%s409 + $0x24] sm:$0xf]
      %v420 = vld [vmem:[%s409 + $0x28] sm:$0xf]
      %v421 = vld [vmem:[%s409 + $0x2c] sm:$0xf]
      %v422 = vld [vmem:[%s409 + $0x30] sm:$0xf]
      %v423 = vld [vmem:[%s409 + $0x34] sm:$0xf]
      %v424 = vld [vmem:[%s409 + $0x38] sm:$0xf]
      %v425 = vld [vmem:[%s409 + $0x3c] sm:$0xf]
      %v437 = vunpack.c.l.b16 %v382
      %v438 = vunpack.c.l.b16 %v383
      %v439 = vunpack.c.l.b16 %v384
      %v440 = vunpack.c.l.b16 %v385
      %v441 = vunpack.c.l.b16 %v386
      %v442 = vunpack.c.l.b16 %v387
      %v443 = vunpack.c.l.b16 %v388
      %v444 = vunpack.c.l.b16 %v389
      %v445 = vunpack.c.l.b16 %v390
      %v446 = vunpack.c.l.b16 %v391
      %v447 = vunpack.c.l.b16 %v408
      %v448 = vpack.c.b16 %v438, %v437
      %v449 = vpack.c.b16 %v440, %v439
      %v450 = vpack.c.b16 %v442, %v441
      %v451 = vpack.c.b16 %v444, %v443
      %v452 = vpack.c.b16 %v446, %v445
      %v453 = vpack.c.b16 %v447, %v447
      %vm454 = vsmask.f32 7424
      %v456 = vshrl.u32 %v448, 16
      %v458 = vshll.u32 %v448, 16
      %v460 = vrot.slane %v458, 1
      %v461 = vor.u32 %v456, %v460
      %v463 = vshll.u32 %v449, 16
      %v465 = vrot.slane %v463, 1
      %v466 = vsel %vm454, %v461, %v465
      %v467 = vshrl.u32 %v449, 16
      %v469 = vor.u32 %v467, %v465
      %v471 = vshll.u32 %v450, 16
      %v473 = vrot.slane %v471, 1
      %v474 = vsel %vm454, %v469, %v473
      %v475 = vshrl.u32 %v450, 16
      %v477 = vor.u32 %v475, %v473
      %v479 = vshll.u32 %v451, 16
      %v481 = vrot.slane %v479, 1
      %v482 = vsel %vm454, %v477, %v481
      %v483 = vshrl.u32 %v451, 16
      %v485 = vor.u32 %v483, %v481
      %v487 = vshll.u32 %v452, 16
      %v489 = vrot.slane %v487, 1
      %v490 = vsel %vm454, %v485, %v489
      %v491 = vshrl.u32 %v452, 16
      %v493 = vor.u32 %v491, %v489
      %v495 = vshll.u32 %v453, 16
      %v497 = vrot.slane %v495, 1
      %v498 = vsel %vm454, %v493, %v497
      %v520 = vunpack.c.l.b16 %v410
      %v521 = vunpack.c.l.b16 %v411
      %v522 = vunpack.c.l.b16 %v412
      %v523 = vunpack.c.l.b16 %v413
      %v524 = vunpack.c.l.b16 %v414
      %v525 = vunpack.c.l.b16 %v415
      %v526 = vunpack.c.l.b16 %v416
      %v527 = vunpack.c.l.b16 %v417
      %v528 = vunpack.c.l.b16 %v418
      %v529 = vunpack.c.l.b16 %v419
      %v530 = vunpack.c.l.b16 %v420
      %v531 = vunpack.c.l.b16 %v421
      %v532 = vunpack.c.l.b16 %v422
      %v533 = vunpack.c.l.b16 %v423
      %v534 = vunpack.c.l.b16 %v424
      %v535 = vunpack.c.l.b16 %v425
      %v536 = vpack.c.b16 %v521, %v520
      %v537 = vpack.c.b16 %v523, %v522
      %v538 = vpack.c.b16 %v525, %v524
      %v539 = vpack.c.b16 %v527, %v526
      %v540 = vpack.c.b16 %v529, %v528
      %v541 = vpack.c.b16 %v531, %v530
      %v542 = vpack.c.b16 %v533, %v532
      %v543 = vpack.c.b16 %v535, %v534
      %552 = vmatprep.subr.bf16.mxu0 0
      %553 = vmatpush1.bf16.msra.mxu0 %v536
      %554 = vmatprep.subr.bf16.mxu0 0
      %555 = vmatpush1.bf16.msra.mxu0 %v537
      %556 = vmatprep.subr.bf16.mxu0 0
      %557 = vmatpush1.bf16.msra.mxu0 %v538
      %558 = vmatprep.subr.bf16.mxu0 0
      %559 = vmatpush1.bf16.msra.mxu0 %v539
      %560 = vmatprep.subr.bf16.mxu0 0
      %561 = vmatpush1.bf16.msra.mxu0 %v540
      %562 = vmatprep.subr.bf16.mxu0 0
      %563 = vmatpush1.bf16.msra.mxu0 %v541
      %564 = vmatprep.subr.bf16.mxu0 0
      %565 = vmatpush1.bf16.msra.mxu0 %v542
      %566 = vmatprep.subr.bf16.mxu0 0
      %567 = vmatpush1.bf16.msra.mxu0 %v543
      %568 = vmatprep.subr.bf16.mxu0 0
      %569 = vmatpush1.bf16.msra.mxu0 0
      %570 = vmatprep.subr.bf16.mxu0 0
      %571 = vmatpush1.bf16.msra.mxu0 0
      %572 = vmatprep.subr.bf16.mxu0 0
      %573 = vmatpush1.bf16.msra.mxu0 0
      %574 = vmatprep.subr.bf16.mxu0 0
      %575 = vmatpush1.bf16.msra.mxu0 0
      %576 = vmatprep.subr.bf16.mxu0 0
      %577 = vmatpush1.bf16.msra.mxu0 0
      %578 = vmatprep.subr.bf16.mxu0 0
      %579 = vmatpush1.bf16.msra.mxu0 0
      %580 = vmatprep.subr.bf16.mxu0 0
      %581 = vmatpush1.bf16.msra.mxu0 0
      %582 = vmatprep.subr.bf16.mxu0 0
      %583 = vmatpush1.bf16.msra.mxu0 0
      %584 = vmatprep.mubr.bf16.mxu0 0
      %585 = vmatmul.mubr.bf16.gmra.mrb[0].mxu0 %v466
      %v586 = vpop.f32.mrb[0].mxu0
      %v587 = vadd.f32 0.0, %v586
      %v588 = vpop.f32.mrb[0].mxu0
      %v589 = vpop.f32.mrb[0].mxu0
      %v590 = vadd.f32 0.0, %v589
      %v591 = vpop.f32.mrb[0].mxu0
      %592 = vmatprep.mubr.bf16.mxu0 0
      %593 = vmatmul.mubr.bf16.gmra.mrb[0].mxu0 %v474
      %v594 = vpop.f32.mrb[0].mxu0
      %v595 = vadd.f32 0.0, %v594
      %v596 = vpop.f32.mrb[0].mxu0
      %v597 = vpop.f32.mrb[0].mxu0
      %v598 = vadd.f32 0.0, %v597
      %v599 = vpop.f32.mrb[0].mxu0
      %600 = vmatprep.mubr.bf16.mxu0 0
      %601 = vmatmul.mubr.bf16.gmra.mrb[0].mxu0 %v482
      %v602 = vpop.f32.mrb[0].mxu0
      %v603 = vadd.f32 0.0, %v602
      %v604 = vpop.f32.mrb[0].mxu0
      %v605 = vpop.f32.mrb[0].mxu0
      %v606 = vadd.f32 0.0, %v605
      %v607 = vpop.f32.mrb[0].mxu0
      %608 = vmatprep.mubr.bf16.mxu0 0
      %609 = vmatmul.mubr.bf16.gmra.mrb[0].mxu0 %v490
      %v610 = vpop.f32.mrb[0].mxu0
      %v611 = vadd.f32 0.0, %v610
      %v612 = vpop.f32.mrb[0].mxu0
      %v613 = vpop.f32.mrb[0].mxu0
      %v614 = vadd.f32 0.0, %v613
      %v615 = vpop.f32.mrb[0].mxu0
      %616 = vmatprep.mubr.bf16.mxu0 0
      %617 = vmatmul.mubr.bf16.gmra.mrb[0].mxu0 %v498
      %v618 = vpop.f32.mrb[0].mxu0
      %v619 = vadd.f32 0.0, %v618
      %v620 = vpop.f32.mrb[0].mxu0
      %v621 = vpop.f32.mrb[0].mxu0
      %v622 = vadd.f32 0.0, %v621
      %v623 = vpop.f32.mrb[0].mxu0
      %624 = vdwg.mxu0
      %v646 = vunpack.c.l.b16 %v392
      %v647 = vunpack.c.l.b16 %v393
      %v648 = vunpack.c.l.b16 %v394
      %v649 = vunpack.c.l.b16 %v395
      %v650 = vunpack.c.l.b16 %v396
      %v651 = vunpack.c.l.b16 %v397
      %v652 = vunpack.c.l.b16 %v398
      %v653 = vunpack.c.l.b16 %v399
      %v654 = vunpack.c.l.b16 %v400
      %v655 = vunpack.c.l.b16 %v401
      %v656 = vunpack.c.l.b16 %v402
      %v657 = vunpack.c.l.b16 %v403
      %v658 = vunpack.c.l.b16 %v404
      %v659 = vunpack.c.l.b16 %v405
      %v660 = vunpack.c.l.b16 %v406
      %v661 = vunpack.c.l.b16 %v407
      %v662 = vpack.c.b16 %v647, %v646
      %v663 = vpack.c.b16 %v649, %v648
      %v664 = vpack.c.b16 %v651, %v650
      %v665 = vpack.c.b16 %v653, %v652
      %v666 = vpack.c.b16 %v655, %v654
      %v667 = vpack.c.b16 %v657, %v656
      %v668 = vpack.c.b16 %v659, %v658
      %v669 = vpack.c.b16 %v661, %v660
      %678 = vmatprep.subr.bf16.mxu0 0
      %679 = vmatpush1.bf16.msra.mxu0 %v662
      %680 = vmatprep.subr.bf16.mxu0 0
      %681 = vmatpush1.bf16.msra.mxu0 %v663
      %682 = vmatprep.subr.bf16.mxu0 0
      %683 = vmatpush1.bf16.msra.mxu0 %v664
      %684 = vmatprep.subr.bf16.mxu0 0
      %685 = vmatpush1.bf16.msra.mxu0 %v665
      %686 = vmatprep.subr.bf16.mxu0 0
      %687 = vmatpush1.bf16.msra.mxu0 %v666
      %688 = vmatprep.subr.bf16.mxu0 0
      %689 = vmatpush1.bf16.msra.mxu0 %v667
      %690 = vmatprep.subr.bf16.mxu0 0
      %691 = vmatpush1.bf16.msra.mxu0 %v668
      %692 = vmatprep.subr.bf16.mxu0 0
      %693 = vmatpush1.bf16.msra.mxu0 %v669
      %694 = vmatprep.subr.bf16.mxu0 0
      %695 = vmatpush1.bf16.msra.mxu0 0
      %696 = vmatprep.subr.bf16.mxu0 0
      %697 = vmatpush1.bf16.msra.mxu0 0
      %698 = vmatprep.subr.bf16.mxu0 0
      %699 = vmatpush1.bf16.msra.mxu0 0
      %700 = vmatprep.subr.bf16.mxu0 0
      %701 = vmatpush1.bf16.msra.mxu0 0
      %702 = vmatprep.subr.bf16.mxu0 0
      %703 = vmatpush1.bf16.msra.mxu0 0
      %704 = vmatprep.subr.bf16.mxu0 0
      %705 = vmatpush1.bf16.msra.mxu0 0
      %706 = vmatprep.subr.bf16.mxu0 0
      %707 = vmatpush1.bf16.msra.mxu0 0
      %708 = vmatprep.subr.bf16.mxu0 0
      %709 = vmatpush1.bf16.msra.mxu0 0
      %710 = vmatprep.mubr.bf16.mxu0 0
      %711 = vmatmul.mubr.bf16.gmra.mrb[0].mxu0 %v448
      %v712 = vpop.f32.mrb[0].mxu0
      %v713 = vadd.f32 %v587, %v712
      %v714 = vpop.f32.mrb[0].mxu0
      %v715 = vpop.f32.mrb[0].mxu0
      %v716 = vadd.f32 %v590, %v715
      %v717 = vpop.f32.mrb[0].mxu0
      %718 = vmatprep.mubr.bf16.mxu0 0
      %719 = vmatmul.mubr.bf16.gmra.mrb[0].mxu0 %v449
      %v720 = vpop.f32.mrb[0].mxu0
      %v721 = vadd.f32 %v595, %v720
      %v722 = vpop.f32.mrb[0].mxu0
      %v723 = vpop.f32.mrb[0].mxu0
      %v724 = vadd.f32 %v598, %v723
      %v725 = vpop.f32.mrb[0].mxu0
      %726 = vmatprep.mubr.bf16.mxu0 0
      %727 = vmatmul.mubr.bf16.gmra.mrb[0].mxu0 %v450
      %v728 = vpop.f32.mrb[0].mxu0
      %v729 = vadd.f32 %v603, %v728
      %v730 = vpop.f32.mrb[0].mxu0
      %v731 = vpop.f32.mrb[0].mxu0
      %v732 = vadd.f32 %v606, %v731
      %v733 = vpop.f32.mrb[0].mxu0
      %734 = vmatprep.mubr.bf16.mxu0 0
      %735 = vmatmul.mubr.bf16.gmra.mrb[0].mxu0 %v451
      %v736 = vpop.f32.mrb[0].mxu0
      %v737 = vadd.f32 %v611, %v736
      %v738 = vpop.f32.mrb[0].mxu0
      %v739 = vpop.f32.mrb[0].mxu0
      %v740 = vadd.f32 %v614, %v739
      %v741 = vpop.f32.mrb[0].mxu0
      %742 = vmatprep.mubr.bf16.mxu0 0
      %743 = vmatmul.mubr.bf16.gmra.mrb[0].mxu0 %v452
      %v744 = vpop.f32.mrb[0].mxu0
      %v745 = vadd.f32 %v619, %v744
      %v746 = vpop.f32.mrb[0].mxu0
      %v747 = vpop.f32.mrb[0].mxu0
      %v748 = vadd.f32 %v622, %v747
      %v749 = vpop.f32.mrb[0].mxu0
      %750 = vdwg.mxu0
      %v751 = vld [vmem:[#allocation2 + $0x4] sm:$0xe]
      %v752 = vld [vmem:[#allocation2 + $0x8] sm:$0xf]
      %v753 = vld [vmem:[#allocation2 + $0xc] sm:$0xf]
      %v754 = vld [vmem:[#allocation2 + $0x10] sm:$0xf]
      %v755 = vld [vmem:[#allocation2 + $0x14] sm:$0xf]
      %v756 = vld [vmem:[#allocation2 + $0x18] sm:$0xf]
      %v757 = vld [vmem:[#allocation2 + $0x1c] sm:$0xf]
      %v758 = vld [vmem:[#allocation2 + $0x20] sm:$0xf]
      %v759 = vld [vmem:[#allocation2 + $0x24] sm:$0xf]
      %v760 = vld [vmem:[#allocation2 + $0x28] sm:$0xf]
      %v761 = vld [vmem:[#allocation2 + $0x2c] sm:$0x1]
      %s762 = scalar_lea.vmem %s334, 128
      %v763 = vld [vmem:[%s762] sm:$0xf]
      %v764 = vld [vmem:[%s762 + $0x4] sm:$0xf]
      %v765 = vld [vmem:[%s762 + $0x8] sm:$0xf]
      %v766 = vld [vmem:[%s762 + $0xc] sm:$0xf]
      %v767 = vld [vmem:[%s762 + $0x10] sm:$0xf]
      %v768 = vld [vmem:[%s762 + $0x14] sm:$0xf]
      %v769 = vld [vmem:[%s762 + $0x18] sm:$0xf]
      %v770 = vld [vmem:[%s762 + $0x1c] sm:$0xf]
      %v771 = vld [vmem:[%s762 + $0x20] sm:$0xf]
      %v772 = vld [vmem:[%s762 + $0x24] sm:$0xf]
      %v773 = vld [vmem:[%s762 + $0x28] sm:$0xf]
      %v774 = vld [vmem:[%s762 + $0x2c] sm:$0xf]
      %v775 = vld [vmem:[%s762 + $0x30] sm:$0xf]
      %v776 = vld [vmem:[%s762 + $0x34] sm:$0xf]
      %v777 = vld [vmem:[%s762 + $0x38] sm:$0xf]
      %v778 = vld [vmem:[%s762 + $0x3c] sm:$0xf]
      %v790 = vunpack.c.l.b16 %v751
      %v791 = vunpack.c.l.b16 %v752
      %v792 = vunpack.c.l.b16 %v753
      %v793 = vunpack.c.l.b16 %v754
      %v794 = vunpack.c.l.b16 %v755
      %v795 = vunpack.c.l.b16 %v756
      %v796 = vunpack.c.l.b16 %v757
      %v797 = vunpack.c.l.b16 %v758
      %v798 = vunpack.c.l.b16 %v759
      %v799 = vunpack.c.l.b16 %v760
      %v800 = vunpack.c.l.b16 %v761
      %v801 = vpack.c.b16 %v791, %v790
      %v802 = vpack.c.b16 %v793, %v792
      %v803 = vpack.c.b16 %v795, %v794
      %v804 = vpack.c.b16 %v797, %v796
      %v805 = vpack.c.b16 %v799, %v798
      %v806 = vpack.c.b16 %v800, %v800
      %vm807 = vcmask 1046528
      %v808 = vrot.slane %v801, 1
      %v809 = vrot.slane %v802, 1
      %v810 = vsel %vm807, %v808, %v809
      %v811 = vrot.slane %v803, 1
      %v812 = vsel %vm807, %v809, %v811
      %v813 = vrot.slane %v804, 1
      %v814 = vsel %vm807, %v811, %v813
      %v815 = vrot.slane %v805, 1
      %v816 = vsel %vm807, %v813, %v815
      %v817 = vrot.slane %v806, 1
      %v818 = vsel %vm807, %v815, %v817
      %v840 = vunpack.c.l.b16 %v763
      %v841 = vunpack.c.l.b16 %v764
      %v842 = vunpack.c.l.b16 %v765
      %v843 = vunpack.c.l.b16 %v766
      %v844 = vunpack.c.l.b16 %v767
      %v845 = vunpack.c.l.b16 %v768
      %v846 = vunpack.c.l.b16 %v769
      %v847 = vunpack.c.l.b16 %v770
      %v848 = vunpack.c.l.b16 %v771
      %v849 = vunpack.c.l.b16 %v772
      %v850 = vunpack.c.l.b16 %v773
      %v851 = vunpack.c.l.b16 %v774
      %v852 = vunpack.c.l.b16 %v775
      %v853 = vunpack.c.l.b16 %v776
      %v854 = vunpack.c.l.b16 %v777
      %v855 = vunpack.c.l.b16 %v778
      %v856 = vpack.c.b16 %v841, %v840
      %v857 = vpack.c.b16 %v843, %v842
      %v858 = vpack.c.b16 %v845, %v844
      %v859 = vpack.c.b16 %v847, %v846
      %v860 = vpack.c.b16 %v849, %v848
      %v861 = vpack.c.b16 %v851, %v850
      %v862 = vpack.c.b16 %v853, %v852
      %v863 = vpack.c.b16 %v855, %v854
      %872 = vmatprep.subr.bf16.mxu0 0
      %873 = vmatpush1.bf16.msra.mxu0 %v856
      %874 = vmatprep.subr.bf16.mxu0 0
      %875 = vmatpush1.bf16.msra.mxu0 %v857
      %876 = vmatprep.subr.bf16.mxu0 0
      %877 = vmatpush1.bf16.msra.mxu0 %v858
      %878 = vmatprep.subr.bf16.mxu0 0
      %879 = vmatpush1.bf16.msra.mxu0 %v859
      %880 = vmatprep.subr.bf16.mxu0 0
      %881 = vmatpush1.bf16.msra.mxu0 %v860
      %882 = vmatprep.subr.bf16.mxu0 0
      %883 = vmatpush1.bf16.msra.mxu0 %v861
      %884 = vmatprep.subr.bf16.mxu0 0
      %885 = vmatpush1.bf16.msra.mxu0 %v862
      %886 = vmatprep.subr.bf16.mxu0 0
      %887 = vmatpush1.bf16.msra.mxu0 %v863
      %888 = vmatprep.subr.bf16.mxu0 0
      %889 = vmatpush1.bf16.msra.mxu0 0
      %890 = vmatprep.subr.bf16.mxu0 0
      %891 = vmatpush1.bf16.msra.mxu0 0
      %892 = vmatprep.subr.bf16.mxu0 0
      %893 = vmatpush1.bf16.msra.mxu0 0
      %894 = vmatprep.subr.bf16.mxu0 0
      %895 = vmatpush1.bf16.msra.mxu0 0
      %896 = vmatprep.subr.bf16.mxu0 0
      %897 = vmatpush1.bf16.msra.mxu0 0
      %898 = vmatprep.subr.bf16.mxu0 0
      %899 = vmatpush1.bf16.msra.mxu0 0
      %900 = vmatprep.subr.bf16.mxu0 0
      %901 = vmatpush1.bf16.msra.mxu0 0
      %902 = vmatprep.subr.bf16.mxu0 0
      %903 = vmatpush1.bf16.msra.mxu0 0
      %904 = vmatprep.mubr.bf16.mxu0 0
      %905 = vmatmul.mubr.bf16.gmra.mrb[0].mxu0 %v810
      %v906 = vpop.f32.mrb[0].mxu0
      %v907 = vadd.f32 0.0, %v906
      %v908 = vpop.f32.mrb[0].mxu0
      %v909 = vpop.f32.mrb[0].mxu0
      %v910 = vadd.f32 0.0, %v909
      %v911 = vpop.f32.mrb[0].mxu0
      %912 = vmatprep.mubr.bf16.mxu0 0
      %913 = vmatmul.mubr.bf16.gmra.mrb[0].mxu0 %v812
      %v914 = vpop.f32.mrb[0].mxu0
      %v915 = vadd.f32 0.0, %v914
      %v916 = vpop.f32.mrb[0].mxu0
      %v917 = vpop.f32.mrb[0].mxu0
      %v918 = vadd.f32 0.0, %v917
      %v919 = vpop.f32.mrb[0].mxu0
      %920 = vmatprep.mubr.bf16.mxu0 0
      %921 = vmatmul.mubr.bf16.gmra.mrb[0].mxu0 %v814
      %v922 = vpop.f32.mrb[0].mxu0
      %v923 = vadd.f32 0.0, %v922
      %v924 = vpop.f32.mrb[0].mxu0
      %v925 = vpop.f32.mrb[0].mxu0
      %v926 = vadd.f32 0.0, %v925
      %v927 = vpop.f32.mrb[0].mxu0
      %928 = vmatprep.mubr.bf16.mxu0 0
      %929 = vmatmul.mubr.bf16.gmra.mrb[0].mxu0 %v816
      %v930 = vpop.f32.mrb[0].mxu0
      %v931 = vadd.f32 0.0, %v930
      %v932 = vpop.f32.mrb[0].mxu0
      %v933 = vpop.f32.mrb[0].mxu0
      %v934 = vadd.f32 0.0, %v933
      %v935 = vpop.f32.mrb[0].mxu0
      %936 = vmatprep.mubr.bf16.mxu0 0
      %937 = vmatmul.mubr.bf16.gmra.mrb[0].mxu0 %v818
      %v938 = vpop.f32.mrb[0].mxu0
      %v939 = vadd.f32 0.0, %v938
      %v940 = vpop.f32.mrb[0].mxu0
      %v941 = vpop.f32.mrb[0].mxu0
      %v942 = vadd.f32 0.0, %v941
      %v943 = vpop.f32.mrb[0].mxu0
      %944 = vdwg.mxu0
      %v945 = vadd.f32 %v713, %v907
      %v946 = vadd.f32 %v716, %v910
      %v947 = vadd.f32 %v721, %v915
      %v948 = vadd.f32 %v724, %v918
      %v949 = vadd.f32 %v729, %v923
      %v950 = vadd.f32 %v732, %v926
      %v951 = vadd.f32 %v737, %v931
      %v952 = vadd.f32 %v740, %v934
      %v953 = vadd.f32 %v745, %v939
      %v954 = vadd.f32 %v748, %v942
      %v955 = vld [vmem:[#allocation2 + $0x2c] sm:$0x3]
      %s956 = scalar_lea.vmem %s334, 192
      %v957 = vld [vmem:[%s956] sm:$0xf]
      %v958 = vld [vmem:[%s956 + $0x4] sm:$0xf]
      %v959 = vld [vmem:[%s956 + $0x8] sm:$0xf]
      %v960 = vld [vmem:[%s956 + $0xc] sm:$0xf]
      %v961 = vld [vmem:[%s956 + $0x10] sm:$0xf]
      %v962 = vld [vmem:[%s956 + $0x14] sm:$0xf]
      %v963 = vld [vmem:[%s956 + $0x18] sm:$0xf]
      %v964 = vld [vmem:[%s956 + $0x1c] sm:$0xf]
      %v965 = vld [vmem:[%s956 + $0x20] sm:$0xf]
      %v966 = vld [vmem:[%s956 + $0x24] sm:$0xf]
      %v967 = vld [vmem:[%s956 + $0x28] sm:$0xf]
      %v968 = vld [vmem:[%s956 + $0x2c] sm:$0xf]
      %v969 = vld [vmem:[%s956 + $0x30] sm:$0xf]
      %v970 = vld [vmem:[%s956 + $0x34] sm:$0xf]
      %v971 = vld [vmem:[%s956 + $0x38] sm:$0xf]
      %v972 = vld [vmem:[%s956 + $0x3c] sm:$0xf]
      %v974 = vunpack.c.l.b16 %v955
      %v975 = vpack.c.b16 %v974, %v974
      %vm976 = vsmask.f32 6400
      %v978 = vshrl.u32 %v801, 16
      %v980 = vrot.slane %v978, 1
      %v981 = vshll.u32 %v801, 16
      %v983 = vrot.slane %v981, 2
      %v984 = vor.u32 %v980, %v983
      %v986 = vshrl.u32 %v802, 16
      %v988 = vrot.slane %v986, 1
      %v989 = vshll.u32 %v802, 16
      %v991 = vrot.slane %v989, 2
      %v992 = vor.u32 %v988, %v991
      %v993 = vsel %vm976, %v984, %v992
      %v995 = vshrl.u32 %v803, 16
      %v997 = vrot.slane %v995, 1
      %v998 = vshll.u32 %v803, 16
      %v1000 = vrot.slane %v998, 2
      %v1001 = vor.u32 %v997, %v1000
      %v1002 = vsel %vm976, %v992, %v1001
      %v1004 = vshrl.u32 %v804, 16
      %v1006 = vrot.slane %v1004, 1
      %v1007 = vshll.u32 %v804, 16
      %v1009 = vrot.slane %v1007, 2
      %v1010 = vor.u32 %v1006, %v1009
      %v1011 = vsel %vm976, %v1001, %v1010
      %v1013 = vshrl.u32 %v805, 16
      %v1015 = vrot.slane %v1013, 1
      %v1016 = vshll.u32 %v805, 16
      %v1018 = vrot.slane %v1016, 2
      %v1019 = vor.u32 %v1015, %v1018
      %v1020 = vsel %vm976, %v1010, %v1019
      %v1022 = vshrl.u32 %v975, 16
      %v1024 = vrot.slane %v1022, 1
      %v1025 = vshll.u32 %v975, 16
      %v1027 = vrot.slane %v1025, 2
      %v1028 = vor.u32 %v1024, %v1027
      %v1029 = vsel %vm976, %v1019, %v1028
      %v1051 = vunpack.c.l.b16 %v957
      %v1052 = vunpack.c.l.b16 %v958
      %v1053 = vunpack.c.l.b16 %v959
      %v1054 = vunpack.c.l.b16 %v960
      %v1055 = vunpack.c.l.b16 %v961
      %v1056 = vunpack.c.l.b16 %v962
      %v1057 = vunpack.c.l.b16 %v963
      %v1058 = vunpack.c.l.b16 %v964
      %v1059 = vunpack.c.l.b16 %v965
      %v1060 = vunpack.c.l.b16 %v966
      %v1061 = vunpack.c.l.b16 %v967
      %v1062 = vunpack.c.l.b16 %v968
      %v1063 = vunpack.c.l.b16 %v969
      %v1064 = vunpack.c.l.b16 %v970
      %v1065 = vunpack.c.l.b16 %v971
      %v1066 = vunpack.c.l.b16 %v972
      %v1067 = vpack.c.b16 %v1052, %v1051
      %v1068 = vpack.c.b16 %v1054, %v1053
      %v1069 = vpack.c.b16 %v1056, %v1055
      %v1070 = vpack.c.b16 %v1058, %v1057
      %v1071 = vpack.c.b16 %v1060, %v1059
      %v1072 = vpack.c.b16 %v1062, %v1061
      %v1073 = vpack.c.b16 %v1064, %v1063
      %v1074 = vpack.c.b16 %v1066, %v1065
      %1083 = vmatprep.subr.bf16.mxu0 0
      %1084 = vmatpush1.bf16.msra.mxu0 %v1067
      %1085 = vmatprep.subr.bf16.mxu0 0
      %1086 = vmatpush1.bf16.msra.mxu0 %v1068
      %1087 = vmatprep.subr.bf16.mxu0 0
      %1088 = vmatpush1.bf16.msra.mxu0 %v1069
      %1089 = vmatprep.subr.bf16.mxu0 0
      %1090 = vmatpush1.bf16.msra.mxu0 %v1070
      %1091 = vmatprep.subr.bf16.mxu0 0
      %1092 = vmatpush1.bf16.msra.mxu0 %v1071
      %1093 = vmatprep.subr.bf16.mxu0 0
      %1094 = vmatpush1.bf16.msra.mxu0 %v1072
      %1095 = vmatprep.subr.bf16.mxu0 0
      %1096 = vmatpush1.bf16.msra.mxu0 %v1073
      %1097 = vmatprep.subr.bf16.mxu0 0
      %1098 = vmatpush1.bf16.msra.mxu0 %v1074
      %1099 = vmatprep.subr.bf16.mxu0 0
      %1100 = vmatpush1.bf16.msra.mxu0 0
      %1101 = vmatprep.subr.bf16.mxu0 0
      %1102 = vmatpush1.bf16.msra.mxu0 0
      %1103 = vmatprep.subr.bf16.mxu0 0
      %1104 = vmatpush1.bf16.msra.mxu0 0
      %1105 = vmatprep.subr.bf16.mxu0 0
      %1106 = vmatpush1.bf16.msra.mxu0 0
      %1107 = vmatprep.subr.bf16.mxu0 0
      %1108 = vmatpush1.bf16.msra.mxu0 0
      %1109 = vmatprep.subr.bf16.mxu0 0
      %1110 = vmatpush1.bf16.msra.mxu0 0
      %1111 = vmatprep.subr.bf16.mxu0 0
      %1112 = vmatpush1.bf16.msra.mxu0 0
      %1113 = vmatprep.subr.bf16.mxu0 0
      %1114 = vmatpush1.bf16.msra.mxu0 0
      %1115 = vmatprep.mubr.bf16.mxu0 0
      %1116 = vmatmul.mubr.bf16.gmra.mrb[0].mxu0 %v993
      %v1117 = vpop.f32.mrb[0].mxu0
      %v1118 = vadd.f32 0.0, %v1117
      %v1119 = vpop.f32.mrb[0].mxu0
      %v1120 = vpop.f32.mrb[0].mxu0
      %v1121 = vadd.f32 0.0, %v1120
      %v1122 = vpop.f32.mrb[0].mxu0
      %1123 = vmatprep.mubr.bf16.mxu0 0
      %1124 = vmatmul.mubr.bf16.gmra.mrb[0].mxu0 %v1002
      %v1125 = vpop.f32.mrb[0].mxu0
      %v1126 = vadd.f32 0.0, %v1125
      %v1127 = vpop.f32.mrb[0].mxu0
      %v1128 = vpop.f32.mrb[0].mxu0
      %v1129 = vadd.f32 0.0, %v1128
      %v1130 = vpop.f32.mrb[0].mxu0
      %1131 = vmatprep.mubr.bf16.mxu0 0
      %1132 = vmatmul.mubr.bf16.gmra.mrb[0].mxu0 %v1011
      %v1133 = vpop.f32.mrb[0].mxu0
      %v1134 = vadd.f32 0.0, %v1133
      %v1135 = vpop.f32.mrb[0].mxu0
      %v1136 = vpop.f32.mrb[0].mxu0
      %v1137 = vadd.f32 0.0, %v1136
      %v1138 = vpop.f32.mrb[0].mxu0
      %1139 = vmatprep.mubr.bf16.mxu0 0
      %1140 = vmatmul.mubr.bf16.gmra.mrb[0].mxu0 %v1020
      %v1141 = vpop.f32.mrb[0].mxu0
      %v1142 = vadd.f32 0.0, %v1141
      %v1143 = vpop.f32.mrb[0].mxu0
      %v1144 = vpop.f32.mrb[0].mxu0
      %v1145 = vadd.f32 0.0, %v1144
      %v1146 = vpop.f32.mrb[0].mxu0
      %1147 = vmatprep.mubr.bf16.mxu0 0
      %1148 = vmatmul.mubr.bf16.gmra.mrb[0].mxu0 %v1029
      %v1149 = vpop.f32.mrb[0].mxu0
      %v1150 = vadd.f32 0.0, %v1149
      %v1151 = vpop.f32.mrb[0].mxu0
      %v1152 = vpop.f32.mrb[0].mxu0
      %v1153 = vadd.f32 0.0, %v1152
      %v1154 = vpop.f32.mrb[0].mxu0
      %1155 = vdwg.mxu0
      %v1156 = vadd.f32 %v945, %v1118
      %v1157 = vadd.f32 %v946, %v1121
      %v1158 = vadd.f32 %v947, %v1126
      %v1159 = vadd.f32 %v948, %v1129
      %v1160 = vadd.f32 %v949, %v1134
      %v1161 = vadd.f32 %v950, %v1137
      %v1162 = vadd.f32 %v951, %v1142
      %v1163 = vadd.f32 %v952, %v1145
      %v1164 = vadd.f32 %v953, %v1150
      %v1165 = vadd.f32 %v954, %v1153
      %v1166 = vld [vmem:[%s337] sm:$0x1]
      %v1168 = vlaneseq
      %v1169 = vshrl.u32 %v1168, 7
      %v1170 = vsub.s32 0, %v1169
      %v1171 = vrot.slane %v1166, %v1170
      %v1173 = vadd.f32 %v1156, %v1171
      %v1174 = vadd.f32 %v1157, %v1171
      %v1175 = vadd.f32 %v1158, %v1171
      %v1176 = vadd.f32 %v1159, %v1171
      %v1177 = vadd.f32 %v1160, %v1171
      %v1178 = vadd.f32 %v1161, %v1171
      %v1179 = vadd.f32 %v1162, %v1171
      %v1180 = vadd.f32 %v1163, %v1171
      %v1181 = vadd.f32 %v1164, %v1171
      %v1182 = vadd.f32 %v1165, %v1171
      %v1183 = vpack.c.bf16 %v1174, %v1173
      %v1184 = vpack.c.bf16 %v1176, %v1175
      %v1185 = vpack.c.bf16 %v1178, %v1177
      %v1186 = vpack.c.bf16 %v1180, %v1179
      %v1187 = vpack.c.bf16 %v1182, %v1181
      %v1193 = vunpack.c.l.b16 %v1183
      %v1194 = vunpack.c.h.b16 %v1183
      %v1195 = vunpack.c.l.b16 %v1184
      %v1196 = vunpack.c.h.b16 %v1184
      %v1197 = vunpack.c.l.b16 %v1185
      %v1198 = vunpack.c.h.b16 %v1185
      %v1199 = vunpack.c.l.b16 %v1186
      %v1200 = vunpack.c.h.b16 %v1186
      %v1201 = vunpack.c.l.b16 %v1187
      %v1202 = vunpack.c.h.b16 %v1187
      %v1203 = vpack.c.b16 %v1193, %v1193
      %v1204 = vpack.c.b16 %v1194, %v1194
      %v1205 = vpack.c.b16 %v1195, %v1195
      %v1206 = vpack.c.b16 %v1196, %v1196
      %v1207 = vpack.c.b16 %v1197, %v1197
      %v1208 = vpack.c.b16 %v1198, %v1198
      %v1209 = vpack.c.b16 %v1199, %v1199
      %v1210 = vpack.c.b16 %v1200, %v1200
      %v1211 = vpack.c.b16 %v1201, %v1201
      %v1212 = vpack.c.b16 %v1202, %v1202
      %1223 = vst [vmem:[%s349] sm:$0xf] %v1203
      %1224 = vst [vmem:[%s349 + $0x4] sm:$0xf] %v1204
      %1225 = vst [vmem:[%s349 + $0x8] sm:$0xf] %v1205
      %1226 = vst [vmem:[%s349 + $0xc] sm:$0xf] %v1206
      %1227 = vst [vmem:[%s349 + $0x10] sm:$0xf] %v1207
      %1228 = vst [vmem:[%s349 + $0x14] sm:$0xf] %v1208
      %1229 = vst [vmem:[%s349 + $0x18] sm:$0xf] %v1209
      %1230 = vst [vmem:[%s349 + $0x1c] sm:$0xf] %v1210
      %1231 = vst [vmem:[%s349 + $0x20] sm:$0xf] %v1211
      %1232 = vst [vmem:[%s349 + $0x24] sm:$0xf] %v1212
      %s1233 = smul.u32 10, %s21
      %p1234 = scmp.lt.s32.totalorder %s20, 1
      %s1235 = scalar_select %p1234, %s20, 1
      %p1236 = scmp.lt.s32.totalorder %s1233, 9
      %s1237 = scalar_select %p1236, %s1233, 9
      %p1238 = scmp.lt.s32.totalorder %s22, 0
      %s1239 = scalar_select %p1238, %s22, 0
      %s1240 = sadd.s32 %s1239, %s1237
      %s1241 = smul.addr %s1235, 10
      %s1242 = sadd.s32 %s1240, %s1241
      %s1243 = smul.addr %s1242, 4
      %s1244 = scalar_lea.vmem %s4, %s1243
      // Predicated region
      $region41: #{downsample_conv.1} parent=35 // pred_check
        %p1245 = pneg %p168
      $region42: #{downsample_conv.1} parent=35 // pred_check_branch
        %1247 = sbr.rel (%p1245) target = $region44
      $region43: #{downsample_conv.1} parent=35 // pred_region
        %s1248 = smul.u32 10, %s21
      $region44: #{downsample_conv.1} parent=35 // pred_fallthru
        _
    $region36: #{downsample_conv.1} parent=5 // pred_fallthru
      _
    %p1249 = scmp.le.s32.totalorder 2, %s10
    // Predicated region
    $region45: #{downsample_conv.1} parent=5 // pred_check
      %p1250 = pneg %p1249
    $region46: #{downsample_conv.1} parent=5 // pred_check_branch
      %1252 = sbr.rel (%p1250) target = $region48
    $region47: #{downsample_conv.1} parent=5 // pred_region
      %s1253 = ssub.s32 %s10, 2
      // Predicated region
      $region49: #{downsample_conv.1} parent=47 // pred_check
        %p1254 = pneg %p174
      $region50: #{downsample_conv.1} parent=47 // pred_check_branch
        %1256 = sbr.rel (%p1254) target = $region52
      $region51: #{downsample_conv.1} parent=47 // pred_region
        %s1257 = smul.u32 10, %s24
        %p1258 = scmp.lt.s32.totalorder %s23, 1
        %s1259 = scalar_select %p1258, %s23, 1
        %p1260 = scmp.lt.s32.totalorder %s1257, 9
        %s1261 = scalar_select %p1260, %s1257, 9
        %p1262 = scmp.lt.s32.totalorder %s25, 0
        %s1263 = scalar_select %p1262, %s25, 0
        %s1264 = sadd.s32 %s1263, %s1261
        %s1265 = smul.addr %s1259, 10
        %s1266 = sadd.s32 %s1264, %s1265
        %s1267 = smul.addr %s1266, 4
        %s1268 = scalar_lea.vmem %s4, %s1267
      $region52: #{downsample_conv.1} parent=47 // pred_fallthru
        _
    $region48: #{downsample_conv.1} parent=5 // pred_fallthru
      _
  $region6: #{downsample_conv.1} parent=0 // loop_footer
    %s14 = sadd.s32 1, %s10
  $region7: #{downsample_conv.1} parent=0 // loop_footer_branch
    %9 = sbr.rel target = $region3
  $region8: #{downsample_conv.1} parent=0 // loop_exit
    _

</llo_original>
